<compile_context>
chip_gen: v7x
topology: tpu7x:2x2x1
jax: 0.10.0
libtpu: 0.0.40
codegen_flags: <defaults>
</compile_context>

<pallas_src>
import jax
import jax.numpy as jnp
from jax import lax
from jax.experimental import pallas as pl
from jax.experimental.pallas import tpu as pltpu


def _make_particle_gnn_kernel(L_real, Lt, mxu_dtype):
    """Builds the per-grid-step kernel; L_real / Lt / mxu_dtype are trace-time constants."""

    def kernel(feat_ref, wfused_ref, b1_ref, w2_ref, b2_ref, out_ref, tgt_scr, wt_scr):
        TB, Lp, C = feat_ref.shape
        twoC = 2 * C
        nrb = Lp // Lt

        # ---- fused feature matmul for all TB*Lp nodes: [W1_src | W1_tgt | Wg^T Wp^T] --
        feat = feat_ref[...].reshape(TB * Lp, C)                       # mxu dtype
        fused = jnp.dot(feat, wfused_ref[...],
                        preferred_element_type=jnp.float32)           # (TB*Lp, 5C) f32
        src_hb_all = fused[:, :twoC] + b1_ref[...]                     # b1 folded once
        tgt_h_all = fused[:, twoC:2 * twoC]                            # (TB*Lp, 2C)
        h_all = fused[:, 2 * twoC:]                                    # feat @ Wg^T @ Wp^T

        b2 = b2_ref[0]                                                 # scalar from SMEM

        # Zero edge weights whose *source* is a padded node so deg / aggregation of real
        # targets are unaffected (padded target rows are dropped by the wrapper).
        if L_real != Lp:
            src_mask = (lax.broadcasted_iota(jnp.int32, (1, Lp), 1) < L_real
                        ).astype(jnp.float32)
        else:
            src_mask = None

        for tb in range(TB):
            lo = tb * Lp
            tgt_scr[...] = tgt_h_all[lo:lo + Lp]                       # (Lp, 2C)
            src_t = jnp.transpose(src_hb_all[lo:lo + Lp])              # (2C, Lp) src on lanes
            h = h_all[lo:lo + Lp]                                      # (Lp, C)

            # ---- pair-MLP over tgt-row blocks: (Lt, Lp) accumulator stays in vregs ----
            def row_block(r0):
                tgt_blk = tgt_scr[pl.ds(r0, Lt), :]                    # (Lt, 2C)
                acc = jnp.zeros((Lt, Lp), dtype=jnp.float32)
                for k in range(twoC):                                  # scalar FMAs (VALU)
                    contrib = jnp.maximum(tgt_blk[:, k:k + 1] + src_t[k:k + 1, :], 0.0)
                    acc = acc + w2_ref[k] * contrib
                w_blk = jnp.maximum(jnp.tanh(acc + b2), 0.0)           # w_blk[t,s] = w[s,t]
                if src_mask is not None:
                    w_blk = w_blk * src_mask
                wt_scr[pl.ds(r0, Lt), :] = w_blk

            if nrb == 1:
                row_block(0)
            else:
                @pl.loop(0, nrb)
                def _(rb):
                    row_block(pl.multiple_of(rb * Lt, Lt))

            # ---- GCN aggregation (symmetric normalization), plain MXU matmul ----------
            w_t = wt_scr[...]                                          # (Lp, Lp) [tgt, src]
            deg = jnp.sum(w_t, axis=1, keepdims=True)                  # weighted in-degree
            d_inv = jnp.where(deg > 0.0, lax.rsqrt(deg), 0.0)          # (Lp, 1)
            agg = d_inv * jnp.dot(w_t.astype(mxu_dtype),
                                  (d_inv * h).astype(mxu_dtype),
                                  preferred_element_type=jnp.float32)  # (Lp, C)
            out_ref[tb] = agg.astype(out_ref.dtype)

    return kernel


def particle_gnn_forward(x, c, params, tb=None, mxu_dtype=jnp.float32):
    """x: (B, N, T, C), c: (B, M, T, C); att_type='hybrid', mask=None, dropout=0."""
    B, N, T, C = x.shape
    M = c.shape[1]
    L = (N + M) * T
    kv = jnp.concatenate([x, c], axis=1).reshape(B, L, C)

    Lt = 8                                            # tgt-row block (sublane extent)
    Lp = ((L + Lt - 1) // Lt) * Lt                    # pad node count to sublane multiple
    feat = kv if Lp == L else jnp.pad(kv, ((0, 0), (0, Lp - L), (0, 0)))

    # tb heuristic: per-sample work ~ C*Lp^2 dwarfs the ~0.35us step overhead for large
    # graphs, and the grid should stay >= 2 "parallel" steps for v7x megacore.
    if tb is None:
        if Lp >= 128 or B == 1:
            tb = 1
        else:
            cands = [d for d in range(1, min(B, 8) + 1) if B % d == 0 and B // d >= 2]
            tb = max(cands) if cands else 1
    assert B % tb == 0
    twoC, fivec = 2 * C, 5 * C

    in_dtype = jnp.dtype(mxu_dtype)
    feat = feat.astype(in_dtype)
    wfused = params["wfused"].astype(in_dtype)

    # VMEM budget: double-buffered in/out blocks + weights + scratch + in-kernel temps,
    # 2x headroom, capped at 48 MiB (v7x has 64 MiB physical VMEM per TensorCore).
    it = in_dtype.itemsize
    ot = jnp.dtype(x.dtype).itemsize
    need = (2 * tb * Lp * C * (it + ot)                       # double-buffered feat/out
            + 2 * (C * fivec * it + twoC * 4)                 # weights
            + (Lp * twoC + Lp * Lp) * 4                       # scratch (tgt block, w_t)
            + (tb * Lp * fivec + twoC * Lp + tb * Lp * C + Lt * Lp) * 4)   # temporaries
    vmem_limit = int(min(48 * 1024 * 1024, max(32 * 1024 * 1024, 2 * need)))

    cost = pl.CostEstimate(
        flops=int(B * (Lp * Lp * (8 * C + 6)                  # pair-MLP + norm elementwise
                       + 2 * Lp * Lp * C                      # aggregation matmul
                       + 2 * Lp * C * fivec)),                # fused feature matmul
        transcendentals=int(B * (Lp * Lp + Lp)),              # tanh + rsqrt
        bytes_accessed=int(B * Lp * C * (it + ot)
                           + (B // tb) * (C * fivec * it + (2 * twoC + 1) * 4)))

    kernel = _make_particle_gnn_kernel(L, Lt, in_dtype)
    out = pl.pallas_call(
        kernel,
        out_shape=jax.ShapeDtypeStruct((B, Lp, C), x.dtype),
        grid=(B // tb,),
        in_specs=[
            pl.BlockSpec((tb, Lp, C), lambda i: (i, 0, 0)),            # feat
            pl.BlockSpec((C, fivec), lambda i: (0, 0)),                # fused weights
            pl.BlockSpec((1, twoC), lambda i: (0, 0)),                 # b1
            pl.BlockSpec(memory_space=pltpu.MemorySpace.SMEM),         # w2 (scalars)
            pl.BlockSpec(memory_space=pltpu.MemorySpace.SMEM),         # b2 (scalar)
        ],
        out_specs=pl.BlockSpec((tb, Lp, C), lambda i: (i, 0, 0)),
        scratch_shapes=[
            pltpu.VMEM((Lp, twoC), jnp.float32),                       # tgt_h (per sample)
            pltpu.VMEM((Lp, Lp), jnp.float32),                         # w_t   (per sample)
        ],
        compiler_params=pltpu.CompilerParams(
            dimension_semantics=("parallel",),
            vmem_limit_bytes=vmem_limit,
        ),
        cost_estimate=cost,
    )(feat, wfused, params["b1"], params["w2"], params["b2"])

    if Lp != L:
        out = out[:, :L]
    return out.reshape(B, N + M, T, C)


def init_params(key, C):
    """Deterministic synthetic parameters, shapes per ParticleGNN.__init__ (torch layout)."""
    twoC = 2 * C
    ks = jax.random.split(key, 6)
    raw = dict(
        W1=jax.random.normal(ks[0], (twoC, twoC), jnp.float32) * 0.3,  # link_prediction[0]
        b1=jax.random.normal(ks[1], (twoC,), jnp.float32) * 0.1,
        W2=jax.random.normal(ks[2], (1, twoC), jnp.float32) * 0.3,     # link_prediction[2]
        b2=jax.random.normal(ks[3], (1,), jnp.float32) * 0.1,
        Wg=jax.random.normal(ks[4], (C, C), jnp.float32) * 0.3,        # GCNConv.lin (no bias)
        Wp=jax.random.normal(ks[5], (C, C), jnp.float32) * 0.3,        # proj (no bias)
    )
    W1T = raw["W1"].T                                                  # (2C, 2C)
    kernel_params = dict(
        # fused RHS: [src half of W1^T | tgt half of W1^T | Wg^T @ Wp^T]  -> (C, 5C)
        wfused=jnp.concatenate([W1T[:C], W1T[C:], raw["Wg"].T @ raw["Wp"].T], axis=1),
        b1=raw["b1"].reshape(1, twoC),
        w2=raw["W2"].reshape(twoC),        # (2C,) scalars, SMEM
        b2=raw["b2"].reshape(1),           # (1,)  scalar,  SMEM
    )
    return raw, kernel_params


def reference_forward(x, c, raw):
    """Plain-JAX reference that materializes all pairs explicitly (mirrors torch code)."""
    B, N, T, C = x.shape
    M = c.shape[1]
    L = (N + M) * T
    kv = jnp.concatenate([x, c], axis=1).reshape(B, L, C)
    outs = []
    for b in range(B):
        feat = kv[b]
        src = jnp.repeat(feat, L, axis=0)          # cartesian_prod: first index major
        tgt = jnp.tile(feat, (L, 1))
        pairs = jnp.concatenate([src, tgt], axis=-1)            # (L*L, 2C)
        hid = jax.nn.relu(pairs @ raw["W1"].T + raw["b1"])
        s = hid @ raw["W2"].T + raw["b2"]                       # (L*L, 1)
        w = jax.nn.relu(jnp.tanh(s)).reshape(L, L)              # w[src, tgt]
        deg = w.sum(axis=0)
        dinv = jnp.where(deg > 0, deg ** -0.5, 0.0)
        norm = dinv[:, None] * w * dinv[None, :]
        hx = feat @ raw["Wg"].T
        agg = norm.T @ hx
        outs.append(agg @ raw["Wp"].T)
    return jnp.stack(outs).reshape(B, N + M, T, C)


if __name__ == "__main__":
    key = jax.random.PRNGKey(0)
    kx, kc, kp = jax.random.split(key, 3)

    # config 1: B=2, default tb -> tb=1, grid of 2 "parallel" steps (megacore-friendly)
    B, N, M, T, C = 2, 2, 2, 2, 8          # embed_dim=8, n_head=2 (divisible)
    x = jax.random.normal(kx, (B, N, T, C), jnp.float32)
    c = jax.random.normal(kc, (B, M, T, C), jnp.float32)
    raw_params, kernel_params = init_params(kp, C)

    out = jax.block_until_ready(particle_gnn_forward(x, c, kernel_params))
    ref = reference_forward(x, c, raw_params)
    assert out.shape == (B, N + M, T, C), out.shape
    assert jnp.allclose(out, ref, atol=1e-3, rtol=1e-3), float(jnp.max(jnp.abs(out - ref)))

    # config 2: B=4 with tb=2 -> grid of 2, exercises multi-sample grid steps
    B2 = 4
    x2 = jax.random.normal(jax.random.PRNGKey(1), (B2, N, T, C), jnp.float32)
    c2 = jax.random.normal(jax.random.PRNGKey(2), (B2, M, T, C), jnp.float32)
    out2 = jax.block_until_ready(particle_gnn_forward(x2, c2, kernel_params, tb=2))
    ref2 = reference_forward(x2, c2, raw_params)
    assert out2.shape == (B2, N + M, T, C), out2.shape
    assert jnp.allclose(out2, ref2, atol=1e-3, rtol=1e-3), float(jnp.max(jnp.abs(out2 - ref2)))

    # config 3: L = (N+M)*T = 9 (not a multiple of 8) -> padding + source mask + pl.loop path
    N3, M3, T3 = 1, 2, 3
    x3 = jax.random.normal(jax.random.PRNGKey(3), (B, N3, T3, C), jnp.float32)
    c3 = jax.random.normal(jax.random.PRNGKey(4), (B, M3, T3, C), jnp.float32)
    out3 = jax.block_until_ready(particle_gnn_forward(x3, c3, kernel_params))
    ref3 = reference_forward(x3, c3, raw_params)
    assert out3.shape == (B, N3 + M3, T3, C), out3.shape
    assert jnp.allclose(out3, ref3, atol=1e-3, rtol=1e-3), float(jnp.max(jnp.abs(out3 - ref3)))

    # config 4: bf16-MXU path (feat/weights/aggregation in bf16, f32 accumulation) smoke test
    out4 = jax.block_until_ready(
        particle_gnn_forward(x, c, kernel_params, mxu_dtype=jnp.bfloat16))
    assert out4.shape == (B, N + M, T, C), out4.shape
    assert bool(jnp.all(jnp.isfinite(out4)))
    assert float(jnp.max(jnp.abs(out4 - ref))) < 0.5

    print("KERNEL_OK")
</pallas_src>

<mosaic_0001>
module attributes {stable_mosaic.version = 11 : i64} {
  func.func @kernel(%arg0: i32, %arg1: memref<1x8x8xf32, #tpu.memory_space<vmem>>, %arg2: memref<8x40xf32, #tpu.memory_space<vmem>>, %arg3: memref<1x16xf32, #tpu.memory_space<vmem>>, %arg4: memref<16xf32, #tpu.memory_space<smem>>, %arg5: memref<1xf32, #tpu.memory_space<smem>>, %arg6: memref<1x8x8xf32, #tpu.memory_space<vmem>>, %arg7: memref<8x16xf32, #tpu.memory_space<vmem>>, %arg8: memref<8x8xf32, #tpu.memory_space<vmem>>) attributes {dimension_semantics = [#tpu.dimension_semantics<parallel>], iteration_bounds = array<i64: 2>, scalar_prefetch = 0 : i64, scratch_operands = 2 : i64, tpu.core_type = #tpu.core_type<tc>, window_params = [{transform_indices = @transform_0, window_bounds = array<i64: 1, 8, 8>}, {pipeline_mode = #tpu.pipeline_mode<synchronous>, transform_indices = @transform_1, window_bounds = array<i64: 8, 40>}, {pipeline_mode = #tpu.pipeline_mode<synchronous>, transform_indices = @transform_2, window_bounds = array<i64: 1, 16>}, {transform_indices = @transform_3, window_bounds = array<i64: 16>}, {transform_indices = @transform_4, window_bounds = array<i64: 1>}, {transform_indices = @transform_5, window_bounds = array<i64: 1, 8, 8>}]} {
    %c0 = arith.constant 0 : index
    %c0_0 = arith.constant 0 : index
    %c0_1 = arith.constant 0 : index
    %0 = vector.load %arg1[%c0, %c0_0, %c0_1] : memref<1x8x8xf32, #tpu.memory_space<vmem>>, vector<1x8x8xf32>
    %1 = vector.shape_cast %0 : vector<1x8x8xf32> to vector<8x8xf32>
    %c0_2 = arith.constant 0 : index
    %c0_3 = arith.constant 0 : index
    %2 = vector.load %arg2[%c0_2, %c0_3] : memref<8x40xf32, #tpu.memory_space<vmem>>, vector<8x40xf32>
    %cst = arith.constant dense<0.000000e+00> : vector<8x40xf32>
    %3 = tpu.matmul %1, %2, %cst {dimension_numbers = #tpu.dot_dimension_numbers<[1], [0], [0], [1], [0, 0, 1, 1], [], []>} : vector<8x8xf32>, vector<8x40xf32>, vector<8x40xf32> -> vector<8x40xf32>
    %4 = vector.extract_strided_slice %3 {offsets = [0, 0], sizes = [8, 16], strides = [1, 1]} : vector<8x40xf32> to vector<8x16xf32>
    %c0_4 = arith.constant 0 : index
    %c0_5 = arith.constant 0 : index
    %5 = vector.load %arg3[%c0_4, %c0_5] : memref<1x16xf32, #tpu.memory_space<vmem>>, vector<1x16xf32>
    %6 = vector.broadcast %5 : vector<1x16xf32> to vector<8x16xf32>
    %7 = arith.addf %4, %6 : vector<8x16xf32>
    %8 = vector.extract_strided_slice %3 {offsets = [0, 16], sizes = [8, 16], strides = [1, 1]} : vector<8x40xf32> to vector<8x16xf32>
    %9 = vector.extract_strided_slice %3 {offsets = [0, 32], sizes = [8, 8], strides = [1, 1]} : vector<8x40xf32> to vector<8x8xf32>
    %c0_6 = arith.constant 0 : index
    %10 = memref.load %arg5[%c0_6] : memref<1xf32, #tpu.memory_space<smem>>
    %c0_7 = arith.constant 0 : index
    %c0_8 = arith.constant 0 : index
    %11 = vector.load %arg7[%c0_7, %c0_8] : memref<8x16xf32, #tpu.memory_space<vmem>>, vector<8x16xf32>
    tpu.vector_store %arg7[%c0_7, %c0_8], %8 {strides = array<i32>} : memref<8x16xf32, #tpu.memory_space<vmem>>, vector<8x16xf32>,
    %12 = tpu.transpose %7, [1, 0] : vector<8x16xf32> -> vector<16x8xf32>
    %c0_9 = arith.constant 0 : index
    %c0_10 = arith.constant 0 : index
    %13 = vector.load %arg7[%c0_9, %c0_10] : memref<8x16xf32, #tpu.memory_space<vmem>>, vector<8x16xf32>
    %cst_11 = arith.constant 0.000000e+00 : f32
    %14 = vector.broadcast %cst_11 : f32 to vector<8x8xf32>
    %15 = vector.extract_strided_slice %13 {offsets = [0, 0], sizes = [8, 1], strides = [1, 1]} : vector<8x16xf32> to vector<8x1xf32>
    %16 = vector.extract_strided_slice %12 {offsets = [0, 0], sizes = [1, 8], strides = [1, 1]} : vector<16x8xf32> to vector<1x8xf32>
    %17 = vector.broadcast %15 : vector<8x1xf32> to vector<8x8xf32>
    %18 = vector.broadcast %16 : vector<1x8xf32> to vector<8x8xf32>
    %19 = arith.addf %17, %18 : vector<8x8xf32>
    %cst_12 = arith.constant 0.000000e+00 : f32
    %20 = vector.broadcast %cst_12 : f32 to vector<8x8xf32>
    %21 = arith.maximumf %19, %20 : vector<8x8xf32>
    %c0_13 = arith.constant 0 : index
    %22 = memref.load %arg4[%c0_13] : memref<16xf32, #tpu.memory_space<smem>>
    %23 = vector.broadcast %22 : f32 to vector<8x8xf32>
    %24 = arith.mulf %23, %21 : vector<8x8xf32>
    %25 = arith.addf %14, %24 : vector<8x8xf32>
    %26 = vector.extract_strided_slice %13 {offsets = [0, 1], sizes = [8, 1], strides = [1, 1]} : vector<8x16xf32> to vector<8x1xf32>
    %27 = vector.extract_strided_slice %12 {offsets = [1, 0], sizes = [1, 8], strides = [1, 1]} : vector<16x8xf32> to vector<1x8xf32>
    %28 = vector.broadcast %26 : vector<8x1xf32> to vector<8x8xf32>
    %29 = vector.broadcast %27 : vector<1x8xf32> to vector<8x8xf32>
    %30 = arith.addf %28, %29 : vector<8x8xf32>
    %cst_14 = arith.constant 0.000000e+00 : f32
    %31 = vector.broadcast %cst_14 : f32 to vector<8x8xf32>
    %32 = arith.maximumf %30, %31 : vector<8x8xf32>
    %c1 = arith.constant 1 : index
    %33 = memref.load %arg4[%c1] : memref<16xf32, #tpu.memory_space<smem>>
    %34 = vector.broadcast %33 : f32 to vector<8x8xf32>
    %35 = arith.mulf %34, %32 : vector<8x8xf32>
    %36 = arith.addf %25, %35 : vector<8x8xf32>
    %37 = vector.extract_strided_slice %13 {offsets = [0, 2], sizes = [8, 1], strides = [1, 1]} : vector<8x16xf32> to vector<8x1xf32>
    %38 = vector.extract_strided_slice %12 {offsets = [2, 0], sizes = [1, 8], strides = [1, 1]} : vector<16x8xf32> to vector<1x8xf32>
    %39 = vector.broadcast %37 : vector<8x1xf32> to vector<8x8xf32>
    %40 = vector.broadcast %38 : vector<1x8xf32> to vector<8x8xf32>
    %41 = arith.addf %39, %40 : vector<8x8xf32>
    %cst_15 = arith.constant 0.000000e+00 : f32
    %42 = vector.broadcast %cst_15 : f32 to vector<8x8xf32>
    %43 = arith.maximumf %41, %42 : vector<8x8xf32>
    %c2 = arith.constant 2 : index
    %44 = memref.load %arg4[%c2] : memref<16xf32, #tpu.memory_space<smem>>
    %45 = vector.broadcast %44 : f32 to vector<8x8xf32>
    %46 = arith.mulf %45, %43 : vector<8x8xf32>
    %47 = arith.addf %36, %46 : vector<8x8xf32>
    %48 = vector.extract_strided_slice %13 {offsets = [0, 3], sizes = [8, 1], strides = [1, 1]} : vector<8x16xf32> to vector<8x1xf32>
    %49 = vector.extract_strided_slice %12 {offsets = [3, 0], sizes = [1, 8], strides = [1, 1]} : vector<16x8xf32> to vector<1x8xf32>
    %50 = vector.broadcast %48 : vector<8x1xf32> to vector<8x8xf32>
    %51 = vector.broadcast %49 : vector<1x8xf32> to vector<8x8xf32>
    %52 = arith.addf %50, %51 : vector<8x8xf32>
    %cst_16 = arith.constant 0.000000e+00 : f32
    %53 = vector.broadcast %cst_16 : f32 to vector<8x8xf32>
    %54 = arith.maximumf %52, %53 : vector<8x8xf32>
    %c3 = arith.constant 3 : index
    %55 = memref.load %arg4[%c3] : memref<16xf32, #tpu.memory_space<smem>>
    %56 = vector.broadcast %55 : f32 to vector<8x8xf32>
    %57 = arith.mulf %56, %54 : vector<8x8xf32>
    %58 = arith.addf %47, %57 : vector<8x8xf32>
    %59 = vector.extract_strided_slice %13 {offsets = [0, 4], sizes = [8, 1], strides = [1, 1]} : vector<8x16xf32> to vector<8x1xf32>
    %60 = vector.extract_strided_slice %12 {offsets = [4, 0], sizes = [1, 8], strides = [1, 1]} : vector<16x8xf32> to vector<1x8xf32>
    %61 = vector.broadcast %59 : vector<8x1xf32> to vector<8x8xf32>
    %62 = vector.broadcast %60 : vector<1x8xf32> to vector<8x8xf32>
    %63 = arith.addf %61, %62 : vector<8x8xf32>
    %cst_17 = arith.constant 0.000000e+00 : f32
    %64 = vector.broadcast %cst_17 : f32 to vector<8x8xf32>
    %65 = arith.maximumf %63, %64 : vector<8x8xf32>
    %c4 = arith.constant 4 : index
    %66 = memref.load %arg4[%c4] : memref<16xf32, #tpu.memory_space<smem>>
    %67 = vector.broadcast %66 : f32 to vector<8x8xf32>
    %68 = arith.mulf %67, %65 : vector<8x8xf32>
    %69 = arith.addf %58, %68 : vector<8x8xf32>
    %70 = vector.extract_strided_slice %13 {offsets = [0, 5], sizes = [8, 1], strides = [1, 1]} : vector<8x16xf32> to vector<8x1xf32>
    %71 = vector.extract_strided_slice %12 {offsets = [5, 0], sizes = [1, 8], strides = [1, 1]} : vector<16x8xf32> to vector<1x8xf32>
    %72 = vector.broadcast %70 : vector<8x1xf32> to vector<8x8xf32>
    %73 = vector.broadcast %71 : vector<1x8xf32> to vector<8x8xf32>
    %74 = arith.addf %72, %73 : vector<8x8xf32>
    %cst_18 = arith.constant 0.000000e+00 : f32
    %75 = vector.broadcast %cst_18 : f32 to vector<8x8xf32>
    %76 = arith.maximumf %74, %75 : vector<8x8xf32>
    %c5 = arith.constant 5 : index
    %77 = memref.load %arg4[%c5] : memref<16xf32, #tpu.memory_space<smem>>
    %78 = vector.broadcast %77 : f32 to vector<8x8xf32>
    %79 = arith.mulf %78, %76 : vector<8x8xf32>
    %80 = arith.addf %69, %79 : vector<8x8xf32>
    %81 = vector.extract_strided_slice %13 {offsets = [0, 6], sizes = [8, 1], strides = [1, 1]} : vector<8x16xf32> to vector<8x1xf32>
    %82 = vector.extract_strided_slice %12 {offsets = [6, 0], sizes = [1, 8], strides = [1, 1]} : vector<16x8xf32> to vector<1x8xf32>
    %83 = vector.broadcast %81 : vector<8x1xf32> to vector<8x8xf32>
    %84 = vector.broadcast %82 : vector<1x8xf32> to vector<8x8xf32>
    %85 = arith.addf %83, %84 : vector<8x8xf32>
    %cst_19 = arith.constant 0.000000e+00 : f32
    %86 = vector.broadcast %cst_19 : f32 to vector<8x8xf32>
    %87 = arith.maximumf %85, %86 : vector<8x8xf32>
    %c6 = arith.constant 6 : index
    %88 = memref.load %arg4[%c6] : memref<16xf32, #tpu.memory_space<smem>>
    %89 = vector.broadcast %88 : f32 to vector<8x8xf32>
    %90 = arith.mulf %89, %87 : vector<8x8xf32>
    %91 = arith.addf %80, %90 : vector<8x8xf32>
    %92 = vector.extract_strided_slice %13 {offsets = [0, 7], sizes = [8, 1], strides = [1, 1]} : vector<8x16xf32> to vector<8x1xf32>
    %93 = vector.extract_strided_slice %12 {offsets = [7, 0], sizes = [1, 8], strides = [1, 1]} : vector<16x8xf32> to vector<1x8xf32>
    %94 = vector.broadcast %92 : vector<8x1xf32> to vector<8x8xf32>
    %95 = vector.broadcast %93 : vector<1x8xf32> to vector<8x8xf32>
    %96 = arith.addf %94, %95 : vector<8x8xf32>
    %cst_20 = arith.constant 0.000000e+00 : f32
    %97 = vector.broadcast %cst_20 : f32 to vector<8x8xf32>
    %98 = arith.maximumf %96, %97 : vector<8x8xf32>
    %c7 = arith.constant 7 : index
    %99 = memref.load %arg4[%c7] : memref<16xf32, #tpu.memory_space<smem>>
    %100 = vector.broadcast %99 : f32 to vector<8x8xf32>
    %101 = arith.mulf %100, %98 : vector<8x8xf32>
    %102 = arith.addf %91, %101 : vector<8x8xf32>
    %103 = vector.extract_strided_slice %13 {offsets = [0, 8], sizes = [8, 1], strides = [1, 1]} : vector<8x16xf32> to vector<8x1xf32>
    %104 = vector.extract_strided_slice %12 {offsets = [8, 0], sizes = [1, 8], strides = [1, 1]} : vector<16x8xf32> to vector<1x8xf32>
    %105 = vector.broadcast %103 : vector<8x1xf32> to vector<8x8xf32>
    %106 = vector.broadcast %104 : vector<1x8xf32> to vector<8x8xf32>
    %107 = arith.addf %105, %106 : vector<8x8xf32>
    %cst_21 = arith.constant 0.000000e+00 : f32
    %108 = vector.broadcast %cst_21 : f32 to vector<8x8xf32>
    %109 = arith.maximumf %107, %108 : vector<8x8xf32>
    %c8 = arith.constant 8 : index
    %110 = memref.load %arg4[%c8] : memref<16xf32, #tpu.memory_space<smem>>
    %111 = vector.broadcast %110 : f32 to vector<8x8xf32>
    %112 = arith.mulf %111, %109 : vector<8x8xf32>
    %113 = arith.addf %102, %112 : vector<8x8xf32>
    %114 = vector.extract_strided_slice %13 {offsets = [0, 9], sizes = [8, 1], strides = [1, 1]} : vector<8x16xf32> to vector<8x1xf32>
    %115 = vector.extract_strided_slice %12 {offsets = [9, 0], sizes = [1, 8], strides = [1, 1]} : vector<16x8xf32> to vector<1x8xf32>
    %116 = vector.broadcast %114 : vector<8x1xf32> to vector<8x8xf32>
    %117 = vector.broadcast %115 : vector<1x8xf32> to vector<8x8xf32>
    %118 = arith.addf %116, %117 : vector<8x8xf32>
    %cst_22 = arith.constant 0.000000e+00 : f32
    %119 = vector.broadcast %cst_22 : f32 to vector<8x8xf32>
    %120 = arith.maximumf %118, %119 : vector<8x8xf32>
    %c9 = arith.constant 9 : index
    %121 = memref.load %arg4[%c9] : memref<16xf32, #tpu.memory_space<smem>>
    %122 = vector.broadcast %121 : f32 to vector<8x8xf32>
    %123 = arith.mulf %122, %120 : vector<8x8xf32>
    %124 = arith.addf %113, %123 : vector<8x8xf32>
    %125 = vector.extract_strided_slice %13 {offsets = [0, 10], sizes = [8, 1], strides = [1, 1]} : vector<8x16xf32> to vector<8x1xf32>
    %126 = vector.extract_strided_slice %12 {offsets = [10, 0], sizes = [1, 8], strides = [1, 1]} : vector<16x8xf32> to vector<1x8xf32>
    %127 = vector.broadcast %125 : vector<8x1xf32> to vector<8x8xf32>
    %128 = vector.broadcast %126 : vector<1x8xf32> to vector<8x8xf32>
    %129 = arith.addf %127, %128 : vector<8x8xf32>
    %cst_23 = arith.constant 0.000000e+00 : f32
    %130 = vector.broadcast %cst_23 : f32 to vector<8x8xf32>
    %131 = arith.maximumf %129, %130 : vector<8x8xf32>
    %c10 = arith.constant 10 : index
    %132 = memref.load %arg4[%c10] : memref<16xf32, #tpu.memory_space<smem>>
    %133 = vector.broadcast %132 : f32 to vector<8x8xf32>
    %134 = arith.mulf %133, %131 : vector<8x8xf32>
    %135 = arith.addf %124, %134 : vector<8x8xf32>
    %136 = vector.extract_strided_slice %13 {offsets = [0, 11], sizes = [8, 1], strides = [1, 1]} : vector<8x16xf32> to vector<8x1xf32>
    %137 = vector.extract_strided_slice %12 {offsets = [11, 0], sizes = [1, 8], strides = [1, 1]} : vector<16x8xf32> to vector<1x8xf32>
    %138 = vector.broadcast %136 : vector<8x1xf32> to vector<8x8xf32>
    %139 = vector.broadcast %137 : vector<1x8xf32> to vector<8x8xf32>
    %140 = arith.addf %138, %139 : vector<8x8xf32>
    %cst_24 = arith.constant 0.000000e+00 : f32
    %141 = vector.broadcast %cst_24 : f32 to vector<8x8xf32>
    %142 = arith.maximumf %140, %141 : vector<8x8xf32>
    %c11 = arith.constant 11 : index
    %143 = memref.load %arg4[%c11] : memref<16xf32, #tpu.memory_space<smem>>
    %144 = vector.broadcast %143 : f32 to vector<8x8xf32>
    %145 = arith.mulf %144, %142 : vector<8x8xf32>
    %146 = arith.addf %135, %145 : vector<8x8xf32>
    %147 = vector.extract_strided_slice %13 {offsets = [0, 12], sizes = [8, 1], strides = [1, 1]} : vector<8x16xf32> to vector<8x1xf32>
    %148 = vector.extract_strided_slice %12 {offsets = [12, 0], sizes = [1, 8], strides = [1, 1]} : vector<16x8xf32> to vector<1x8xf32>
    %149 = vector.broadcast %147 : vector<8x1xf32> to vector<8x8xf32>
    %150 = vector.broadcast %148 : vector<1x8xf32> to vector<8x8xf32>
    %151 = arith.addf %149, %150 : vector<8x8xf32>
    %cst_25 = arith.constant 0.000000e+00 : f32
    %152 = vector.broadcast %cst_25 : f32 to vector<8x8xf32>
    %153 = arith.maximumf %151, %152 : vector<8x8xf32>
    %c12 = arith.constant 12 : index
    %154 = memref.load %arg4[%c12] : memref<16xf32, #tpu.memory_space<smem>>
    %155 = vector.broadcast %154 : f32 to vector<8x8xf32>
    %156 = arith.mulf %155, %153 : vector<8x8xf32>
    %157 = arith.addf %146, %156 : vector<8x8xf32>
    %158 = vector.extract_strided_slice %13 {offsets = [0, 13], sizes = [8, 1], strides = [1, 1]} : vector<8x16xf32> to vector<8x1xf32>
    %159 = vector.extract_strided_slice %12 {offsets = [13, 0], sizes = [1, 8], strides = [1, 1]} : vector<16x8xf32> to vector<1x8xf32>
    %160 = vector.broadcast %158 : vector<8x1xf32> to vector<8x8xf32>
    %161 = vector.broadcast %159 : vector<1x8xf32> to vector<8x8xf32>
    %162 = arith.addf %160, %161 : vector<8x8xf32>
    %cst_26 = arith.constant 0.000000e+00 : f32
    %163 = vector.broadcast %cst_26 : f32 to vector<8x8xf32>
    %164 = arith.maximumf %162, %163 : vector<8x8xf32>
    %c13 = arith.constant 13 : index
    %165 = memref.load %arg4[%c13] : memref<16xf32, #tpu.memory_space<smem>>
    %166 = vector.broadcast %165 : f32 to vector<8x8xf32>
    %167 = arith.mulf %166, %164 : vector<8x8xf32>
    %168 = arith.addf %157, %167 : vector<8x8xf32>
    %169 = vector.extract_strided_slice %13 {offsets = [0, 14], sizes = [8, 1], strides = [1, 1]} : vector<8x16xf32> to vector<8x1xf32>
    %170 = vector.extract_strided_slice %12 {offsets = [14, 0], sizes = [1, 8], strides = [1, 1]} : vector<16x8xf32> to vector<1x8xf32>
    %171 = vector.broadcast %169 : vector<8x1xf32> to vector<8x8xf32>
    %172 = vector.broadcast %170 : vector<1x8xf32> to vector<8x8xf32>
    %173 = arith.addf %171, %172 : vector<8x8xf32>
    %cst_27 = arith.constant 0.000000e+00 : f32
    %174 = vector.broadcast %cst_27 : f32 to vector<8x8xf32>
    %175 = arith.maximumf %173, %174 : vector<8x8xf32>
    %c14 = arith.constant 14 : index
    %176 = memref.load %arg4[%c14] : memref<16xf32, #tpu.memory_space<smem>>
    %177 = vector.broadcast %176 : f32 to vector<8x8xf32>
    %178 = arith.mulf %177, %175 : vector<8x8xf32>
    %179 = arith.addf %168, %178 : vector<8x8xf32>
    %180 = vector.extract_strided_slice %13 {offsets = [0, 15], sizes = [8, 1], strides = [1, 1]} : vector<8x16xf32> to vector<8x1xf32>
    %181 = vector.extract_strided_slice %12 {offsets = [15, 0], sizes = [1, 8], strides = [1, 1]} : vector<16x8xf32> to vector<1x8xf32>
    %182 = vector.broadcast %180 : vector<8x1xf32> to vector<8x8xf32>
    %183 = vector.broadcast %181 : vector<1x8xf32> to vector<8x8xf32>
    %184 = arith.addf %182, %183 : vector<8x8xf32>
    %cst_28 = arith.constant 0.000000e+00 : f32
    %185 = vector.broadcast %cst_28 : f32 to vector<8x8xf32>
    %186 = arith.maximumf %184, %185 : vector<8x8xf32>
    %c15 = arith.constant 15 : index
    %187 = memref.load %arg4[%c15] : memref<16xf32, #tpu.memory_space<smem>>
    %188 = vector.broadcast %187 : f32 to vector<8x8xf32>
    %189 = arith.mulf %188, %186 : vector<8x8xf32>
    %190 = arith.addf %179, %189 : vector<8x8xf32>
    %191 = vector.broadcast %10 : f32 to vector<8x8xf32>
    %192 = arith.addf %190, %191 : vector<8x8xf32>
    %193 = math.tanh %192 : vector<8x8xf32>
    %cst_29 = arith.constant 0.000000e+00 : f32
    %194 = vector.broadcast %cst_29 : f32 to vector<8x8xf32>
    %195 = arith.maximumf %193, %194 : vector<8x8xf32>
    %c0_30 = arith.constant 0 : index
    %c0_31 = arith.constant 0 : index
    %196 = vector.load %arg8[%c0_30, %c0_31] : memref<8x8xf32, #tpu.memory_space<vmem>>, vector<8x8xf32>
    tpu.vector_store %arg8[%c0_30, %c0_31], %195 {strides = array<i32>} : memref<8x8xf32, #tpu.memory_space<vmem>>, vector<8x8xf32>,
    %c0_32 = arith.constant 0 : index
    %c0_33 = arith.constant 0 : index
    %197 = vector.load %arg8[%c0_32, %c0_33] : memref<8x8xf32, #tpu.memory_space<vmem>>, vector<8x8xf32>
    %cst_34 = arith.constant dense<0.000000e+00> : vector<8xf32>
    %198 = vector.multi_reduction <add>, %197, %cst_34 [1] : vector<8x8xf32> to vector<8xf32>
    %199 = vector.shape_cast %198 : vector<8xf32> to vector<8x1xf32>
    %cst_35 = arith.constant 0.000000e+00 : f32
    %200 = vector.broadcast %cst_35 : f32 to vector<8x1xf32>
    %201 = arith.cmpf ogt, %199, %200 : vector<8x1xf32>
    %202 = math.rsqrt %199 : vector<8x1xf32>
    %cst_36 = arith.constant 0.000000e+00 : f32
    %203 = vector.broadcast %cst_36 : f32 to vector<8x1xf32>
    %204 = arith.select %201, %202, %203 : vector<8x1xi1>, vector<8x1xf32>
    %205 = vector.broadcast %204 : vector<8x1xf32> to vector<8x8xf32>
    %206 = arith.mulf %205, %9 : vector<8x8xf32>
    %cst_37 = arith.constant dense<0.000000e+00> : vector<8x8xf32>
    %207 = tpu.matmul %197, %206, %cst_37 {dimension_numbers = #tpu.dot_dimension_numbers<[1], [0], [0], [1], [0, 0, 1, 1], [], []>} : vector<8x8xf32>, vector<8x8xf32>, vector<8x8xf32> -> vector<8x8xf32>
    %208 = vector.broadcast %204 : vector<8x1xf32> to vector<8x8xf32>
    %209 = arith.mulf %208, %207 : vector<8x8xf32>
    %c0_38 = arith.constant 0 : index
    %c0_39 = arith.constant 0 : index
    %c0_40 = arith.constant 0 : index
    %210 = vector.load %arg6[%c0_38, %c0_39, %c0_40] : memref<1x8x8xf32, #tpu.memory_space<vmem>>, vector<1x8x8xf32>
    %211 = vector.shape_cast %210 : vector<1x8x8xf32> to vector<8x8xf32>
    %212 = vector.shape_cast %209 : vector<8x8xf32> to vector<1x8x8xf32>
    tpu.vector_store %arg6[%c0_38, %c0_39, %c0_40], %212 {strides = array<i32>} : memref<1x8x8xf32, #tpu.memory_space<vmem>>, vector<1x8x8xf32>,
    return
  }
  func.func @transform_0(%arg0: i32) -> (i32, i32, i32) {
    %c0_i32 = arith.constant 0 : i32
    %c0_i32_0 = arith.constant 0 : i32
    %c0_i32_1 = arith.constant 0 : i32
    return %arg0, %c0_i32, %c0_i32_0 : i32, i32, i32
  }
  func.func @transform_1(%arg0: i32) -> (i32, i32) {
    %c0_i32 = arith.constant 0 : i32
    %c0_i32_0 = arith.constant 0 : i32
    %c0_i32_1 = arith.constant 0 : i32
    return %c0_i32, %c0_i32_0 : i32, i32
  }
  func.func @transform_2(%arg0: i32) -> (i32, i32) {
    %c0_i32 = arith.constant 0 : i32
    %c0_i32_0 = arith.constant 0 : i32
    %c0_i32_1 = arith.constant 0 : i32
    return %c0_i32, %c0_i32_0 : i32, i32
  }
  func.func @transform_3(%arg0: i32) -> i32 {
    %c0_i32 = arith.constant 0 : i32
    %c0_i32_0 = arith.constant 0 : i32
    return %c0_i32 : i32
  }
  func.func @transform_4(%arg0: i32) -> i32 {
    %c0_i32 = arith.constant 0 : i32
    %c0_i32_0 = arith.constant 0 : i32
    return %c0_i32 : i32
  }
  func.func @transform_5(%arg0: i32) -> (i32, i32, i32) {
    %c0_i32 = arith.constant 0 : i32
    %c0_i32_0 = arith.constant 0 : i32
    %c0_i32_1 = arith.constant 0 : i32
    return %arg0, %c0_i32, %c0_i32_0 : i32, i32, i32
  }
}

</mosaic_0001>

<llo_original>
// kernel: tpu_custom_call.1
$region0: #{tpu_custom_call.1}
  #allocation0 [shape = 'u32[]', space=smem, size = 0x4, offset = 0x4, fixed_abs, tag = 'smem constant byte address 0x4 - core index']
  #allocation1 [shape = 'u32[144,128]{1,0:T(1,128)}', space=vmem, size = 0x12000, scoped, tag = 'internal scratch']
  #allocation2 [shape = 'f32[8,16]{1,0:T(8,128)}', space=vmem, size = 0x1000, scoped, tag = 'scratch operand']
  #allocation3 [shape = 'f32[8,8]{1,0:T(8,128)}', space=vmem, size = 0x1000, scoped, tag = 'scratch operand']
  #allocation4 [shape = 'f32[1]{0:T(128)S(6)}', space=smem, size = 0x200, scoped, tag = 'scoped memory for tpu_custom_call.1']
  %s0 = inlined_call_operand.hbm [shape: f32[2,8,8], index: 0, kind: input, shape index: {}]
  %s1 = inlined_call_operand.hbm [shape: f32[8,40], index: 1, kind: input, shape index: {}]
  %s2 = inlined_call_operand.vmem [shape: f32[1,16], index: 2, kind: input, shape index: {}]
  %s3 = inlined_call_operand.vmem [shape: f32[16], index: 3, kind: input, shape index: {}]
  %s4 = inlined_call_operand.<no memory space> [shape: f32[1], index: 4, kind: input, shape index: {}]
  %s5 = inlined_call_operand.hbm [shape: f32[2,8,8], index: 5, kind: output, shape index: {}]
  %s6 = sld [smem:[#allocation0]]
  $region65: #{tpu_custom_call.1} parent=0
    _
  %s8 = ssub.s32 1, %s6
  %s9 = scalar_select 0, %s8, %s6
  %10 = sst [smem:[#allocation4]] %s4
  $region1: #{tpu_custom_call.1} parent=0
    #allocation5 [shape = 'u8[8192]{0}', space=vmem, size = 0x2000, scoped, tag = 'input window, operand 0']
    #allocation6 [shape = 's32[2]{0}', space=sflag, size = 0x8, scoped, tag = 'scoped memory for tpu_custom_call.1']
    #allocation7 [shape = 's32[2]{0}', space=sflag, size = 0x8, scoped, tag = 'scoped memory for tpu_custom_call.1']
    #allocation8 [shape = 's32[2]{0}', space=sflag, size = 0x8, scoped, tag = 'scoped memory for tpu_custom_call.1']
    #allocation9 [shape = 'u8[4096]{0}', space=vmem, size = 0x1000, scoped, tag = 'input window, operand 1, single buffered']
    #allocation10 [shape = 's32[1]{0}', space=sflag, size = 0x4, scoped, tag = 'scoped memory for tpu_custom_call.1']
    #allocation11 [shape = 'u8[512]{0}', space=smem, size = 0x200, scoped, tag = 'input window, operand 3, single buffered']
    #allocation12 [shape = 'u8[8192]{0}', space=vmem, size = 0x2000, scoped, tag = 'output window, operand 0']
    %11 = vsyncpa [#allocation6], 0
    %s12 = scalar_lea.sflag [#allocation6], 1
    %13 = vsyncpa %s12, 0
    %14 = vsyncpa [#allocation10], 0
    %15 = vsyncpa [#allocation8], 0
    %16 = vsyncpa [#allocation7], 0
    %s17 = scalar_lea.sflag [#allocation7], 1
    %18 = vsyncpa %s17, 0
    loop: start=0, step=1, limit=4
    $region2: #{tpu_custom_call.1} parent=1 // loop_pre_header
      _
    $region3: #{tpu_custom_call.1} parent=1 // loop_header
      %s20 = sphi 0, %s24
      %p21 = scmp.ge.s32.totalorder %s20, 4
      %s30 = sphi 0, %s32
      %s33 = sphi 0, %s30
      %s34 = sphi 0, %s33
      %s50 = sphi 0, %s34
      %s54 = sphi 0, %s54
      %s56 = sphi 0, %s54
      %s57 = sphi 0, %s56
      %s71 = sphi 0, %s57
      %s75 = sphi 0, %s75
      %s77 = sphi 0, %s75
      %s78 = sphi 0, %s77
      %s92 = sphi 0, %s78
      %s96 = sphi 0, %s96
      %s98 = sphi 0, %s96
      %s99 = sphi 0, %s98
      %s113 = sphi 0, %s99
      %s117 = sphi 0, %s117
      %s119 = sphi 0, %s117
      %s120 = sphi 0, %s119
      %s134 = sphi 0, %s120
      %s140 = sphi 0, %s142
      %s143 = sphi 0, %s140
      %s144 = sphi 0, %s143
      %s160 = sphi 0, %s144
    $region4: #{tpu_custom_call.1} parent=1 // loop_header_branch
      %23 = sbr.rel (%p21) target = $region8
    $region5: #{tpu_custom_call.1} parent=1 // loop_body
      %s25 = ssub.s32 %s20, 1
      %s26 = ssub.s32 %s20, 2
      %s27 = sadd.s32 %s20, 1
      %s28 = ssub.s32 %s20, %s27
      %p29 = scmp.eq.s32.totalorder %s28, 0
      %s31 = sadd.s32 %s30, 1
      %s32 = scalar_select %p29, %s30, %s31
      %p35 = pneg %p29
      %p36 = scmp.eq.s32.totalorder %s20, 1
      %p37 = por %p35, %p36
      %p38 = scmp.ne.s32.totalorder %s30, %s33
      %p39 = scmp.eq.s32.totalorder %s20, 0
      %p40 = por %p38, %p39
      %p41 = scmp.ne.s32.totalorder %s30, %s33
      %p42 = scmp.eq.s32.totalorder %s25, 1
      %p43 = por %p41, %p42
      %p44 = scmp.ne.s32.totalorder %s33, %s34
      %p45 = scmp.eq.s32.totalorder %s25, 0
      %p46 = por %p44, %p45
      %p47 = scmp.ne.s32.totalorder %s33, %s34
      %p48 = scmp.eq.s32.totalorder %s26, 1
      %p49 = por %p47, %p48
      %p51 = scmp.ne.s32.totalorder %s34, %s50
      %p52 = scmp.eq.s32.totalorder %s26, 0
      %p53 = por %p51, %p52
      %s55 = sadd.s32 %s54, 1
      %p58 = scmp.eq.s32.totalorder %s20, 1
      %p59 = scmp.ne.s32.totalorder %s54, %s56
      %p60 = scmp.eq.s32.totalorder %s20, 0
      %p61 = por %p59, %p60
      %p62 = scmp.ne.s32.totalorder %s54, %s56
      %p63 = scmp.eq.s32.totalorder %s25, 1
      %p64 = por %p62, %p63
      %p65 = scmp.ne.s32.totalorder %s56, %s57
      %p66 = scmp.eq.s32.totalorder %s25, 0
      %p67 = por %p65, %p66
      %p68 = scmp.ne.s32.totalorder %s56, %s57
      %p69 = scmp.eq.s32.totalorder %s26, 1
      %p70 = por %p68, %p69
      %p72 = scmp.ne.s32.totalorder %s57, %s71
      %p73 = scmp.eq.s32.totalorder %s26, 0
      %p74 = por %p72, %p73
      %s76 = sadd.s32 %s75, 1
      %p79 = scmp.eq.s32.totalorder %s20, 1
      %p80 = scmp.ne.s32.totalorder %s75, %s77
      %p81 = scmp.eq.s32.totalorder %s20, 0
      %p82 = por %p80, %p81
      %p83 = scmp.ne.s32.totalorder %s75, %s77
      %p84 = scmp.eq.s32.totalorder %s25, 1
      %p85 = por %p83, %p84
      %p86 = scmp.ne.s32.totalorder %s77, %s78
      %p87 = scmp.eq.s32.totalorder %s25, 0
      %p88 = por %p86, %p87
      %p89 = scmp.ne.s32.totalorder %s77, %s78
      %p90 = scmp.eq.s32.totalorder %s26, 1
      %p91 = por %p89, %p90
      %p93 = scmp.ne.s32.totalorder %s78, %s92
      %p94 = scmp.eq.s32.totalorder %s26, 0
      %p95 = por %p93, %p94
      %s97 = sadd.s32 %s96, 1
      %p100 = scmp.eq.s32.totalorder %s20, 1
      %p101 = scmp.ne.s32.totalorder %s96, %s98
      %p102 = scmp.eq.s32.totalorder %s20, 0
      %p103 = por %p101, %p102
      %p104 = scmp.ne.s32.totalorder %s96, %s98
      %p105 = scmp.eq.s32.totalorder %s25, 1
      %p106 = por %p104, %p105
      %p107 = scmp.ne.s32.totalorder %s98, %s99
      %p108 = scmp.eq.s32.totalorder %s25, 0
      %p109 = por %p107, %p108
      %p110 = scmp.ne.s32.totalorder %s98, %s99
      %p111 = scmp.eq.s32.totalorder %s26, 1
      %p112 = por %p110, %p111
      %p114 = scmp.ne.s32.totalorder %s99, %s113
      %p115 = scmp.eq.s32.totalorder %s26, 0
      %p116 = por %p114, %p115
      %s118 = sadd.s32 %s117, 1
      %p121 = scmp.eq.s32.totalorder %s20, 1
      %p122 = scmp.ne.s32.totalorder %s117, %s119
      %p123 = scmp.eq.s32.totalorder %s20, 0
      %p124 = por %p122, %p123
      %p125 = scmp.ne.s32.totalorder %s117, %s119
      %p126 = scmp.eq.s32.totalorder %s25, 1
      %p127 = por %p125, %p126
      %p128 = scmp.ne.s32.totalorder %s119, %s120
      %p129 = scmp.eq.s32.totalorder %s25, 0
      %p130 = por %p128, %p129
      %p131 = scmp.ne.s32.totalorder %s119, %s120
      %p132 = scmp.eq.s32.totalorder %s26, 1
      %p133 = por %p131, %p132
      %p135 = scmp.ne.s32.totalorder %s120, %s134
      %p136 = scmp.eq.s32.totalorder %s26, 0
      %p137 = por %p135, %p136
      %s138 = ssub.s32 %s20, %s27
      %p139 = scmp.eq.s32.totalorder %s138, 0
      %s141 = sadd.s32 %s140, 1
      %s142 = scalar_select %p139, %s140, %s141
      %p145 = pneg %p139
      %p146 = scmp.eq.s32.totalorder %s20, 1
      %p147 = por %p145, %p146
      %p148 = scmp.ne.s32.totalorder %s140, %s143
      %p149 = scmp.eq.s32.totalorder %s20, 0
      %p150 = por %p148, %p149
      %p151 = scmp.ne.s32.totalorder %s140, %s143
      %p152 = scmp.eq.s32.totalorder %s25, 1
      %p153 = por %p151, %p152
      %p154 = scmp.ne.s32.totalorder %s143, %s144
      %p155 = scmp.eq.s32.totalorder %s25, 0
      %p156 = por %p154, %p155
      %p157 = scmp.ne.s32.totalorder %s143, %s144
      %p158 = scmp.eq.s32.totalorder %s26, 1
      %p159 = por %p157, %p158
      %p161 = scmp.ne.s32.totalorder %s144, %s160
      %p162 = scmp.eq.s32.totalorder %s26, 0
      %p163 = por %p161, %p162
      %p164 = scmp.le.s32.totalorder 1, %s20
      %p165 = scmp.lt.s32.totalorder %s20, 3
      %p166 = pnand %p164, %p165
      %p167 = pneg %p166
      // Predicated region
      $region9: #{tpu_custom_call.1} parent=5 // pred_check
        _
      $region10: #{tpu_custom_call.1} parent=5 // pred_check_branch
        %169 = sbr.rel (%p166) target = $region12
      $region11: #{tpu_custom_call.1} parent=5 // pred_region
        %s170 = ssub.s32 %s20, 1
        // Predicated region
        $region13: #{tpu_custom_call.1} parent=11 // pred_check
          %p171 = pneg %p67
        $region14: #{tpu_custom_call.1} parent=11 // pred_check_branch
          %173 = sbr.rel (%p171) target = $region16
        $region15: #{tpu_custom_call.1} parent=11 // pred_region
          %s175 = ssub.s32 128, 128
          %176 = vsyncadd [#allocation10], %s175
          %s178 = sshll.u32 [#allocation9], 4
          %s179 = int_to_ptr.vmem [resolvable:$true] %s178
          %181 = dma.hbm_to_vmem [thread:$0]  %s1, 128, %s179, [#allocation10]
        $region16: #{tpu_custom_call.1} parent=11 // pred_fallthru
          _
        // Predicated region
        $region17: #{tpu_custom_call.1} parent=11 // pred_check
          %p182 = pneg %p88
        $region18: #{tpu_custom_call.1} parent=11 // pred_check_branch
          %184 = sbr.rel (%p182) target = $region20
        $region19: #{tpu_custom_call.1} parent=11 // pred_region
          _
        $region20: #{tpu_custom_call.1} parent=11 // pred_fallthru
          _
        // Predicated region
        $region21: #{tpu_custom_call.1} parent=11 // pred_check
          %p185 = pneg %p109
        $region22: #{tpu_custom_call.1} parent=11 // pred_check_branch
          %187 = sbr.rel (%p185) target = $region24
        $region23: #{tpu_custom_call.1} parent=11 // pred_region
          %s189 = ssub.s32 16, 16
          %190 = vsyncadd [#allocation8], %s189
          %s192 = sshll.u32 %s3, 4
          %s193 = int_to_ptr.vmem [resolvable:$true] %s192
          %195 = dma.vmem_to_smem %s193, 16, [#allocation11], [#allocation8]
        $region24: #{tpu_custom_call.1} parent=11 // pred_fallthru
          _
        // Predicated region
        $region25: #{tpu_custom_call.1} parent=11 // pred_check
          %p196 = pneg %p130
        $region26: #{tpu_custom_call.1} parent=11 // pred_check_branch
          %198 = sbr.rel (%p196) target = $region28
        $region27: #{tpu_custom_call.1} parent=11 // pred_region
          _
        $region28: #{tpu_custom_call.1} parent=11 // pred_fallthru
          _
      $region12: #{tpu_custom_call.1} parent=5 // pred_fallthru
        _
      %p199 = scmp.lt.s32.totalorder %s20, 2
      // Predicated region
      $region29: #{tpu_custom_call.1} parent=5 // pred_check
        %p200 = pneg %p199
      $region30: #{tpu_custom_call.1} parent=5 // pred_check_branch
        %202 = sbr.rel (%p200) target = $region32
      $region31: #{tpu_custom_call.1} parent=5 // pred_region
        // Predicated region
        $region33: #{tpu_custom_call.1} parent=31 // pred_check
          %p203 = pneg %p40
        $region34: #{tpu_custom_call.1} parent=31 // pred_check_branch
          %205 = sbr.rel (%p203) target = $region36
        $region35: #{tpu_custom_call.1} parent=31 // pred_region
          %s206 = sand.u32 %s30, 1
          %s207 = scalar_lea.sflag [#allocation6], %s206
          %s208 = sand.u32 %s30, 1
          %s209 = smul.addr %s208, 8
          %s210 = scalar_lea.vmem [#allocation5], %s209
          %s212 = ssub.s32 128, 128
          %213 = vsyncadd %s207, %s212
          %s214 = smul.addr %s20, 128
          %s215 = scalar_lea.hbm %s0, %s214
          %s217 = sshll.u32 %s210, 4
          %s218 = int_to_ptr.vmem [resolvable:$true] %s217
          %220 = dma.hbm_to_vmem [thread:$0]  %s215, 128, %s218, %s207
        $region36: #{tpu_custom_call.1} parent=31 // pred_fallthru
          _
      $region32: #{tpu_custom_call.1} parent=5 // pred_fallthru
        _
      %p221 = scmp.le.s32.totalorder 1, %s20
      %p222 = scmp.lt.s32.totalorder %s20, 3
      %p223 = pnand %p221, %p222
      %p224 = pneg %p223
      // Predicated region
      $region37: #{tpu_custom_call.1} parent=5 // pred_check
        _
      $region38: #{tpu_custom_call.1} parent=5 // pred_check_branch
        %226 = sbr.rel (%p223) target = $region40
      $region39: #{tpu_custom_call.1} parent=5 // pred_region
        %s227 = ssub.s32 %s20, 1
        %s228 = sand.u32 %s33, 1
        %s229 = scalar_lea.sflag [#allocation6], %s228
        %s230 = sand.u32 %s33, 1
        %s231 = smul.addr %s230, 8
        %s232 = scalar_lea.vmem [#allocation5], %s231
        // Predicated region
        $region41: #{tpu_custom_call.1} parent=39 // pred_check
          %p233 = pneg %p46
        $region42: #{tpu_custom_call.1} parent=39 // pred_check_branch
          %235 = sbr.rel (%p233) target = $region44
        $region43: #{tpu_custom_call.1} parent=39 // pred_region
          %236 = dma.done %s229, 128
        $region44: #{tpu_custom_call.1} parent=39 // pred_fallthru
          _
        // Predicated region
        $region45: #{tpu_custom_call.1} parent=39 // pred_check
          %p237 = pneg %p67
        $region46: #{tpu_custom_call.1} parent=39 // pred_check_branch
          %239 = sbr.rel (%p237) target = $region48
        $region47: #{tpu_custom_call.1} parent=39 // pred_region
          %240 = dma.done [#allocation10], 128
        $region48: #{tpu_custom_call.1} parent=39 // pred_fallthru
          _
        // Predicated region
        $region49: #{tpu_custom_call.1} parent=39 // pred_check
          %p241 = pneg %p109
        $region50: #{tpu_custom_call.1} parent=39 // pred_check_branch
          %243 = sbr.rel (%p241) target = $region52
        $region51: #{tpu_custom_call.1} parent=39 // pred_region
          %244 = dma.done [#allocation8], 16
        $region52: #{tpu_custom_call.1} parent=39 // pred_fallthru
          _
        %245 = sfence
        %s246 = sand.u32 %s33, 1
        %s247 = scalar_lea.sflag [#allocation6], %s246
        %s248 = sand.u32 %s33, 1
        %s249 = smul.addr %s248, 8
        %s250 = scalar_lea.vmem [#allocation5], %s249
        %p251 = pneg %p46
        %p252 = pneg %p43
        %p253 = pneg %p67
        %p254 = pneg %p64
        %p255 = pneg %p88
        %p256 = pneg %p85
        %p257 = pneg %p109
        %p258 = pneg %p106
        %p259 = pneg %p130
        %p260 = pneg %p127
        %p261 = pneg %p156
        %p262 = pneg %p153
        %s263 = sand.u32 %s143, 1
        %s264 = scalar_lea.sflag [#allocation7], %s263
        %s265 = sand.u32 %s143, 1
        %s266 = smul.addr %s265, 8
        %s267 = scalar_lea.vmem [#allocation12], %s266
        %v268 = vld [vmem:[%s232] sm:$0xff]
        %v269 = vld [vmem:[#allocation9] sm:$0xff]
        %vm270 = vcmask 64512
        %v272 = vsel %vm270, %v268, 0
        %274 = vmatprep.subr.mxu0 0.0
        %275 = vmatpush1.msra.mxu0 %v269
        %276 = vmatprep.subr.mxu0 0.0
        %277 = vmatpush1.msra.mxu0 0.0
        %278 = vmatprep.subr.mxu0 0.0
        %279 = vmatpush1.msra.mxu0 0.0
        %280 = vmatprep.subr.mxu0 0.0
        %281 = vmatpush1.msra.mxu0 0.0
        %282 = vmatprep.subr.mxu0 0.0
        %283 = vmatpush1.msra.mxu0 0.0
        %284 = vmatprep.subr.mxu0 0.0
        %285 = vmatpush1.msra.mxu0 0.0
        %286 = vmatprep.subr.mxu0 0.0
        %287 = vmatpush1.msra.mxu0 0.0
        %288 = vmatprep.subr.mxu0 0.0
        %289 = vmatpush1.msra.mxu0 0.0
        %290 = vmatprep.subr.mxu0 0.0
        %291 = vmatpush1.msra.mxu0 0.0
        %292 = vmatprep.subr.mxu0 0.0
        %293 = vmatpush1.msra.mxu0 0.0
        %294 = vmatprep.subr.mxu0 0.0
        %295 = vmatpush1.msra.mxu0 0.0
        %296 = vmatprep.subr.mxu0 0.0
        %297 = vmatpush1.msra.mxu0 0.0
        %298 = vmatprep.subr.mxu0 0.0
        %299 = vmatpush1.msra.mxu0 0.0
        %300 = vmatprep.subr.mxu0 0.0
        %301 = vmatpush1.msra.mxu0 0.0
        %302 = vmatprep.subr.mxu0 0.0
        %303 = vmatpush1.msra.mxu0 0.0
        %304 = vmatprep.subr.mxu0 0.0
        %305 = vmatpush1.msra.mxu0 0.0
        %306 = vmatprep.subr.mxu0 0.0
        %307 = vmatpush1.msra.mxu0 0.0
        %308 = vmatprep.subr.mxu0 0.0
        %309 = vmatpush1.msra.mxu0 0.0
        %310 = vmatprep.subr.mxu0 0.0
        %311 = vmatpush1.msra.mxu0 0.0
        %312 = vmatprep.subr.mxu0 0.0
        %313 = vmatpush1.msra.mxu0 0.0
        %314 = vmatprep.subr.mxu0 0.0
        %315 = vmatpush1.msra.mxu0 0.0
        %316 = vmatprep.subr.mxu0 0.0
        %317 = vmatpush1.msra.mxu0 0.0
        %318 = vmatprep.subr.mxu0 0.0
        %319 = vmatpush1.msra.mxu0 0.0
        %320 = vmatprep.subr.mxu0 0.0
        %321 = vmatpush1.msra.mxu0 0.0
        %322 = vmatprep.subr.mxu0 0.0
        %323 = vmatpush1.msra.mxu0 0.0
        %324 = vmatprep.subr.mxu0 0.0
        %325 = vmatpush1.msra.mxu0 0.0
        %326 = vmatprep.subr.mxu0 0.0
        %327 = vmatpush1.msra.mxu0 0.0
        %328 = vmatprep.subr.mxu0 0.0
        %329 = vmatpush1.msra.mxu0 0.0
        %330 = vmatprep.subr.mxu0 0.0
        %331 = vmatpush1.msra.mxu0 0.0
        %332 = vmatprep.subr.mxu0 0.0
        %333 = vmatpush1.msra.mxu0 0.0
        %334 = vmatprep.subr.mxu0 0.0
        %335 = vmatpush1.msra.mxu0 0.0
        %336 = vmatprep.subr.mxu0 0.0
        %337 = vmatpush1.msra.mxu0 0.0
        %338 = vmatprep.mubr.f32.mxu0 0.0
        %339 = vmatmul.mubr.f32.gmra.mrb[0].mxu0 %v272
        %v340 = vpop.f32.mrb[0].mxu0
        %v341 = vadd.f32 0.0, %v340
        %v342 = vpop.f32.mrb[0].mxu0
        %343 = vdwg.mxu0
        %v344 = vld [vmem:[%s2] sm:$0x1]
        %v346 = vlaneseq
        %v347 = vshrl.u32 %v346, 7
        %v348 = vsub.s32 0, %v347
        %v349 = vrot.slane %v344, %v348
        %v351 = vadd.f32 %v341, %v349
        %s352 = sld [smem:[#allocation4]]
        %354 = vrot.lane.b32.xlu0 %v341, 112
        %v355 = vpop.permute.xlu0 %354
        %vm357 = vcmask 130048
        %358 = vst.msk [vmem:[#allocation2] sm:$0xff] %vm357, %v355
        %359 = vxpose.xlu0.b32.start [1/16] %v351, 128
        %360 = vxpose.xlu0.b32.cont [2/16] 0.0, 128
        %361 = vxpose.xlu0.b32.cont [3/16] 0.0, 128
        %362 = vxpose.xlu0.b32.cont [4/16] 0.0, 128
        %363 = vxpose.xlu0.b32.cont [5/16] 0.0, 128
        %364 = vxpose.xlu0.b32.cont [6/16] 0.0, 128
        %365 = vxpose.xlu0.b32.cont [7/16] 0.0, 128
        %366 = vxpose.xlu0.b32.cont [8/16] 0.0, 128
        %367 = vxpose.xlu0.b32.cont [9/16] 0.0, 128
        %368 = vxpose.xlu0.b32.cont [10/16] 0.0, 128
        %369 = vxpose.xlu0.b32.cont [11/16] 0.0, 128
        %370 = vxpose.xlu0.b32.cont [12/16] 0.0, 128
        %371 = vxpose.xlu0.b32.cont [13/16] 0.0, 128
        %372 = vxpose.xlu0.b32.cont [14/16] 0.0, 128
        %373 = vxpose.xlu0.b32.cont [15/16] 0.0, 128
        %374 = vxpose.xlu0.b32.end [16/16] 0.0, 128
        %v375 = vpop.trf.xlu0
        %v376 = vpop.trf.xlu0
        %v377 = vpop.trf.xlu0
        %v378 = vpop.trf.xlu0
        %v379 = vpop.trf.xlu0
        %v380 = vpop.trf.xlu0
        %v381 = vpop.trf.xlu0
        %v382 = vpop.trf.xlu0
        %v383 = vpop.trf.xlu0
        %v384 = vpop.trf.xlu0
        %v385 = vpop.trf.xlu0
        %v386 = vpop.trf.xlu0
        %v387 = vpop.trf.xlu0
        %v388 = vpop.trf.xlu0
        %v389 = vpop.trf.xlu0
        %v390 = vpop.trf.xlu0
        %v391 = vld [vmem:[#allocation2] sm:$0xff]
        %393 = vset.pattern.permute.xlu0 0
        %394 = vperm.xlu0 %393, %v391
        %v395 = vpop.permute.xlu0 %394
        %v397 = vlaneseq
        %v398 = vshrl.u32 %v397, 7
        %v399 = vsub.s32 0, %v398
        %v400 = vrot.slane %v375, %v399
        %v401 = vadd.f32 %v395, %v400
        %v402 = vmax.f32 %v401, 0.0
        %s403 = sld [smem:[#allocation11]]
        %v404 = vstv %s403
        %v405 = vmul.f32 %v404, %v402
        %v406 = vadd.f32 %v405, 0.0
        %407 = vset.pattern.permute.xlu0 1
        %408 = vperm.xlu0 %407, %v391
        %v409 = vpop.permute.xlu0 %408
        %v411 = vlaneseq
        %v412 = vshrl.u32 %v411, 7
        %v413 = vsub.s32 1, %v412
        %v414 = vrot.slane %v375, %v413
        %v415 = vadd.f32 %v409, %v414
        %v416 = vmax.f32 %v415, 0.0
        %s417 = sld [smem:[#allocation11 + $0x1]]
        %v418 = vstv %s417
        %v419 = vmul.f32 %v418, %v416
        %v420 = vadd.f32 %v406, %v419
        %421 = vset.pattern.permute.xlu0 2
        %422 = vperm.xlu0 %421, %v391
        %v423 = vpop.permute.xlu0 %422
        %v425 = vlaneseq
        %v426 = vshrl.u32 %v425, 7
        %v427 = vsub.s32 2, %v426
        %v428 = vrot.slane %v375, %v427
        %v429 = vadd.f32 %v423, %v428
        %v430 = vmax.f32 %v429, 0.0
        %s431 = sld [smem:[#allocation11 + $0x2]]
        %v432 = vstv %s431
        %v433 = vmul.f32 %v432, %v430
        %v434 = vadd.f32 %v420, %v433
        %435 = vset.pattern.permute.xlu0 3
        %436 = vperm.xlu0 %435, %v391
        %v437 = vpop.permute.xlu0 %436
        %v439 = vlaneseq
        %v440 = vshrl.u32 %v439, 7
        %v441 = vsub.s32 3, %v440
        %v442 = vrot.slane %v375, %v441
        %v443 = vadd.f32 %v437, %v442
        %v444 = vmax.f32 %v443, 0.0
        %s445 = sld [smem:[#allocation11 + $0x3]]
        %v446 = vstv %s445
        %v447 = vmul.f32 %v446, %v444
        %v448 = vadd.f32 %v434, %v447
        %449 = vset.pattern.permute.xlu0 4
        %450 = vperm.xlu0 %449, %v391
        %v451 = vpop.permute.xlu0 %450
        %v453 = vlaneseq
        %v454 = vshrl.u32 %v453, 7
        %v455 = vsub.s32 4, %v454
        %v456 = vrot.slane %v375, %v455
        %v457 = vadd.f32 %v451, %v456
        %v458 = vmax.f32 %v457, 0.0
        %s459 = sld [smem:[#allocation11 + $0x4]]
        %v460 = vstv %s459
        %v461 = vmul.f32 %v460, %v458
        %v462 = vadd.f32 %v448, %v461
        %463 = vset.pattern.permute.xlu0 5
        %464 = vperm.xlu0 %463, %v391
        %v465 = vpop.permute.xlu0 %464
        %v467 = vlaneseq
        %v468 = vshrl.u32 %v467, 7
        %v469 = vsub.s32 5, %v468
        %v470 = vrot.slane %v375, %v469
        %v471 = vadd.f32 %v465, %v470
        %v472 = vmax.f32 %v471, 0.0
        %s473 = sld [smem:[#allocation11 + $0x5]]
        %v474 = vstv %s473
        %v475 = vmul.f32 %v474, %v472
        %v476 = vadd.f32 %v462, %v475
        %477 = vset.pattern.permute.xlu0 6
        %478 = vperm.xlu0 %477, %v391
        %v479 = vpop.permute.xlu0 %478
        %v481 = vlaneseq
        %v482 = vshrl.u32 %v481, 7
        %v483 = vsub.s32 6, %v482
        %v484 = vrot.slane %v375, %v483
        %v485 = vadd.f32 %v479, %v484
        %v486 = vmax.f32 %v485, 0.0
        %s487 = sld [smem:[#allocation11 + $0x6]]
        %v488 = vstv %s487
        %v489 = vmul.f32 %v488, %v486
        %v490 = vadd.f32 %v476, %v489
        %491 = vset.pattern.permute.xlu0 7
        %492 = vperm.xlu0 %491, %v391
        %v493 = vpop.permute.xlu0 %492
        %v495 = vlaneseq
        %v496 = vshrl.u32 %v495, 7
        %v497 = vsub.s32 7, %v496
        %v498 = vrot.slane %v375, %v497
        %v499 = vadd.f32 %v493, %v498
        %v500 = vmax.f32 %v499, 0.0
        %s501 = sld [smem:[#allocation11 + $0x7]]
        %v502 = vstv %s501
        %v503 = vmul.f32 %v502, %v500
        %v504 = vadd.f32 %v490, %v503
        %505 = vset.pattern.permute.xlu0 8
        %506 = vperm.xlu0 %505, %v391
        %v507 = vpop.permute.xlu0 %506
        %v509 = vlaneseq
        %v510 = vshrl.u32 %v509, 7
        %v511 = vsub.s32 0, %v510
        %v512 = vrot.slane %v376, %v511
        %v513 = vadd.f32 %v507, %v512
        %v514 = vmax.f32 %v513, 0.0
        %s515 = sld [smem:[#allocation11 + $0x8]]
        %v516 = vstv %s515
        %v517 = vmul.f32 %v516, %v514
        %v518 = vadd.f32 %v504, %v517
        %519 = vset.pattern.permute.xlu0 9
        %520 = vperm.xlu0 %519, %v391
        %v521 = vpop.permute.xlu0 %520
        %v523 = vlaneseq
        %v524 = vshrl.u32 %v523, 7
        %v525 = vsub.s32 1, %v524
        %v526 = vrot.slane %v376, %v525
        %v527 = vadd.f32 %v521, %v526
        %v528 = vmax.f32 %v527, 0.0
        %s529 = sld [smem:[#allocation11 + $0x9]]
        %v530 = vstv %s529
        %v531 = vmul.f32 %v530, %v528
        %v532 = vadd.f32 %v518, %v531
        %533 = vset.pattern.permute.xlu0 10
        %534 = vperm.xlu0 %533, %v391
        %v535 = vpop.permute.xlu0 %534
        %v537 = vlaneseq
        %v538 = vshrl.u32 %v537, 7
        %v539 = vsub.s32 2, %v538
        %v540 = vrot.slane %v376, %v539
        %v541 = vadd.f32 %v535, %v540
        %v542 = vmax.f32 %v541, 0.0
        %s543 = sld [smem:[#allocation11 + $0xa]]
        %v544 = vstv %s543
        %v545 = vmul.f32 %v544, %v542
        %v546 = vadd.f32 %v532, %v545
        %547 = vset.pattern.permute.xlu0 11
        %548 = vperm.xlu0 %547, %v391
        %v549 = vpop.permute.xlu0 %548
        %v551 = vlaneseq
        %v552 = vshrl.u32 %v551, 7
        %v553 = vsub.s32 3, %v552
        %v554 = vrot.slane %v376, %v553
        %v555 = vadd.f32 %v549, %v554
        %v556 = vmax.f32 %v555, 0.0
        %s557 = sld [smem:[#allocation11 + $0xb]]
        %v558 = vstv %s557
        %v559 = vmul.f32 %v558, %v556
        %v560 = vadd.f32 %v546, %v559
        %561 = vset.pattern.permute.xlu0 12
        %562 = vperm.xlu0 %561, %v391
        %v563 = vpop.permute.xlu0 %562
        %v565 = vlaneseq
        %v566 = vshrl.u32 %v565, 7
        %v567 = vsub.s32 4, %v566
        %v568 = vrot.slane %v376, %v567
        %v569 = vadd.f32 %v563, %v568
        %v570 = vmax.f32 %v569, 0.0
        %s571 = sld [smem:[#allocation11 + $0xc]]
        %v572 = vstv %s571
        %v573 = vmul.f32 %v572, %v570
        %v574 = vadd.f32 %v560, %v573
        %575 = vset.pattern.permute.xlu0 13
        %576 = vperm.xlu0 %575, %v391
        %v577 = vpop.permute.xlu0 %576
        %v579 = vlaneseq
        %v580 = vshrl.u32 %v579, 7
        %v581 = vsub.s32 5, %v580
        %v582 = vrot.slane %v376, %v581
        %v583 = vadd.f32 %v577, %v582
        %v584 = vmax.f32 %v583, 0.0
        %s585 = sld [smem:[#allocation11 + $0xd]]
        %v586 = vstv %s585
        %v587 = vmul.f32 %v586, %v584
        %v588 = vadd.f32 %v574, %v587
        %589 = vset.pattern.permute.xlu0 14
        %590 = vperm.xlu0 %589, %v391
        %v591 = vpop.permute.xlu0 %590
        %v593 = vlaneseq
        %v594 = vshrl.u32 %v593, 7
        %v595 = vsub.s32 6, %v594
        %v596 = vrot.slane %v376, %v595
        %v597 = vadd.f32 %v591, %v596
        %v598 = vmax.f32 %v597, 0.0
        %s599 = sld [smem:[#allocation11 + $0xe]]
        %v600 = vstv %s599
        %v601 = vmul.f32 %v600, %v598
        %v602 = vadd.f32 %v588, %v601
        %603 = vset.pattern.permute.xlu0 15
        %604 = vperm.xlu0 %603, %v391
        %v605 = vpop.permute.xlu0 %604
        %v607 = vlaneseq
        %v608 = vshrl.u32 %v607, 7
        %v609 = vsub.s32 7, %v608
        %v610 = vrot.slane %v376, %v609
        %v611 = vadd.f32 %v605, %v610
        %v612 = vmax.f32 %v611, 0.0
        %s613 = sld [smem:[#allocation11 + $0xf]]
        %v614 = vstv %s613
        %v615 = vmul.f32 %v614, %v612
        %v616 = vadd.f32 %v602, %v615
        %v617 = vstv %s352
        %v618 = vadd.f32 %v616, %v617
        %v619 = vtanh.pop %v618
        %v620 = vmax.f32 %v619, 0.0
        %621 = vst.msk [vmem:[#allocation3] sm:$0xff] %vm270, %v620
        %v622 = vld [vmem:[#allocation3] sm:$0xff]
        %v623 = vsel %vm270, %v622, 0.0
        %624 = vadd.xlane.f32.xlu0 %v623
        %v625 = vpop.xlane.xlu0 %624
        %vm626 = vcmp.gt.f32.partialorder %v625, 0.0
        %v627 = vrsqrt.pop %v625
        %v628 = vsel %vm626, %v627, 0.0
        %v629 = vmul.f32 %v628, %v341
        %631 = vrot.lane.b32.xlu0 %v629, 96
        %v632 = vpop.permute.xlu0 %631
        %v635 = vsel %vm270, %v622, 0
        %637 = vmatprep.subr.mxu0 0.0
        %638 = vmatpush1.msra.mxu0 %v632
        %639 = vmatprep.subr.mxu0 0.0
        %640 = vmatpush1.msra.mxu0 0.0
        %641 = vmatprep.subr.mxu0 0.0
        %642 = vmatpush1.msra.mxu0 0.0
        %643 = vmatprep.subr.mxu0 0.0
        %644 = vmatpush1.msra.mxu0 0.0
        %645 = vmatprep.subr.mxu0 0.0
        %646 = vmatpush1.msra.mxu0 0.0
        %647 = vmatprep.subr.mxu0 0.0
        %648 = vmatpush1.msra.mxu0 0.0
        %649 = vmatprep.subr.mxu0 0.0
        %650 = vmatpush1.msra.mxu0 0.0
        %651 = vmatprep.subr.mxu0 0.0
        %652 = vmatpush1.msra.mxu0 0.0
        %653 = vmatprep.subr.mxu0 0.0
        %654 = vmatpush1.msra.mxu0 0.0
        %655 = vmatprep.subr.mxu0 0.0
        %656 = vmatpush1.msra.mxu0 0.0
        %657 = vmatprep.subr.mxu0 0.0
        %658 = vmatpush1.msra.mxu0 0.0
        %659 = vmatprep.subr.mxu0 0.0
        %660 = vmatpush1.msra.mxu0 0.0
        %661 = vmatprep.subr.mxu0 0.0
        %662 = vmatpush1.msra.mxu0 0.0
        %663 = vmatprep.subr.mxu0 0.0
        %664 = vmatpush1.msra.mxu0 0.0
        %665 = vmatprep.subr.mxu0 0.0
        %666 = vmatpush1.msra.mxu0 0.0
        %667 = vmatprep.subr.mxu0 0.0
        %668 = vmatpush1.msra.mxu0 0.0
        %669 = vmatprep.subr.mxu0 0.0
        %670 = vmatpush1.msra.mxu0 0.0
        %671 = vmatprep.subr.mxu0 0.0
        %672 = vmatpush1.msra.mxu0 0.0
        %673 = vmatprep.subr.mxu0 0.0
        %674 = vmatpush1.msra.mxu0 0.0
        %675 = vmatprep.subr.mxu0 0.0
        %676 = vmatpush1.msra.mxu0 0.0
        %677 = vmatprep.subr.mxu0 0.0
        %678 = vmatpush1.msra.mxu0 0.0
        %679 = vmatprep.subr.mxu0 0.0
        %680 = vmatpush1.msra.mxu0 0.0
        %681 = vmatprep.subr.mxu0 0.0
        %682 = vmatpush1.msra.mxu0 0.0
        %683 = vmatprep.subr.mxu0 0.0
        %684 = vmatpush1.msra.mxu0 0.0
        %685 = vmatprep.subr.mxu0 0.0
        %686 = vmatpush1.msra.mxu0 0.0
        %687 = vmatprep.subr.mxu0 0.0
        %688 = vmatpush1.msra.mxu0 0.0
        %689 = vmatprep.subr.mxu0 0.0
        %690 = vmatpush1.msra.mxu0 0.0
        %691 = vmatprep.subr.mxu0 0.0
        %692 = vmatpush1.msra.mxu0 0.0
        %693 = vmatprep.subr.mxu0 0.0
        %694 = vmatpush1.msra.mxu0 0.0
        %695 = vmatprep.subr.mxu0 0.0
        %696 = vmatpush1.msra.mxu0 0.0
        %697 = vmatprep.subr.mxu0 0.0
        %698 = vmatpush1.msra.mxu0 0.0
        %699 = vmatprep.subr.mxu0 0.0
        %700 = vmatpush1.msra.mxu0 0.0
        %701 = vmatprep.mubr.f32.mxu0 0.0
        %702 = vmatmul.mubr.f32.gmra.mrb[0].mxu0 %v635
        %v703 = vpop.f32.mrb[0].mxu0
        %v704 = vadd.f32 0.0, %v703
        %v705 = vpop.f32.mrb[0].mxu0
        %706 = vdwg.mxu0
        %v707 = vmul.f32 %v628, %v704
        %708 = vst.msk [vmem:[%s267] sm:$0xff] %vm270, %v707
        %s709 = sand.u32 %s143, 1
        %s710 = scalar_lea.sflag [#allocation7], %s709
        %s711 = sand.u32 %s143, 1
        %s712 = smul.addr %s711, 8
        %s713 = scalar_lea.vmem [#allocation12], %s712
        // Predicated region
        $region53: #{tpu_custom_call.1} parent=39 // pred_check
          %p714 = pneg %p153
        $region54: #{tpu_custom_call.1} parent=39 // pred_check_branch
          %716 = sbr.rel (%p714) target = $region56
        $region55: #{tpu_custom_call.1} parent=39 // pred_region
          %s718 = ssub.s32 128, 128
          %719 = vsyncadd %s710, %s718
          %s720 = smul.addr %s25, 128
          %s721 = scalar_lea.hbm %s5, %s720
          %s723 = sshll.u32 %s713, 4
          %s724 = int_to_ptr.vmem [resolvable:$true] %s723
          %726 = dma.vmem_to_hbm [thread:$0]  %s724, 128, %s721, %s710
        $region56: #{tpu_custom_call.1} parent=39 // pred_fallthru
          _
      $region40: #{tpu_custom_call.1} parent=5 // pred_fallthru
        _
      %p727 = scmp.le.s32.totalorder 2, %s20
      // Predicated region
      $region57: #{tpu_custom_call.1} parent=5 // pred_check
        %p728 = pneg %p727
      $region58: #{tpu_custom_call.1} parent=5 // pred_check_branch
        %730 = sbr.rel (%p728) target = $region60
      $region59: #{tpu_custom_call.1} parent=5 // pred_region
        %s731 = ssub.s32 %s20, 2
        // Predicated region
        $region61: #{tpu_custom_call.1} parent=59 // pred_check
          %p732 = pneg %p159
        $region62: #{tpu_custom_call.1} parent=59 // pred_check_branch
          %734 = sbr.rel (%p732) target = $region64
        $region63: #{tpu_custom_call.1} parent=59 // pred_region
          %s735 = sand.u32 %s144, 1
          %s736 = scalar_lea.sflag [#allocation7], %s735
          %s737 = sand.u32 %s144, 1
          %s738 = smul.addr %s737, 8
          %s739 = scalar_lea.vmem [#allocation12], %s738
          %740 = dma.done %s736, 128
        $region64: #{tpu_custom_call.1} parent=59 // pred_fallthru
          _
      $region60: #{tpu_custom_call.1} parent=5 // pred_fallthru
        _
    $region6: #{tpu_custom_call.1} parent=1 // loop_footer
      %s24 = sadd.s32 1, %s20
    $region7: #{tpu_custom_call.1} parent=1 // loop_footer_branch
      %19 = sbr.rel target = $region3
    $region8: #{tpu_custom_call.1} parent=1 // loop_exit
      _
    %741 = vsyncpa [#allocation6], 1
    %s742 = scalar_lea.sflag [#allocation6], 1
    %743 = vsyncpa %s742, 1
    %744 = vsyncpa [#allocation10], 1
    %745 = vsyncpa [#allocation7], 1
    %s746 = scalar_lea.sflag [#allocation7], 1
    %747 = vsyncpa %s746, 1
    %748 = vsyncpa [#allocation8], 1
    %s749 = scalar_lea.sflag [#allocation8], 1
    %750 = vsyncpa %s749, 1

</llo_original>
